<compile_context>
chip_gen: v7x
topology: tpu7x:2x2x1
jax: 0.10.0
libtpu: 0.0.40
codegen_flags: <defaults>
</compile_context>

<pallas_src>
import functools

import jax
import jax.numpy as jnp
from jax import lax
from jax.experimental import pallas as pl
from jax.experimental.pallas import tpu as pltpu

GAMMA = 2.0
SMOOTH_NR = 1e-6
SMOOTH_DR = 1e-6
CLASS_WEIGHTS = (1.0, 1.0, 1.0, 1.0)
NUM_CORES = 2               # leading "parallel" grid axis; engages both TCs on v7x
APPROX_RECIPROCAL = True    # EUP approx 1/x in sigmoid (~1e-4 rel err); False = exact


def _pick_tile(n, rows, pair_itemsize, max_pair_bytes=9 * 1024 * 1024):
    """Lane tile: multiple of 128, one (logits + targets) block pair stays under
    max_pair_bytes, capped at the lane-aligned full extent."""
    n_aligned = pl.cdiv(n, 128) * 128
    cap = (max_pair_bytes // (rows * pair_itemsize)) // 128 * 128
    cap = max(cap, 128)
    return min(cap, n_aligned)


def _lane_tree_sum(v, k):
    """(rows, k*128) -> (rows, 128) via a tree of lane-aligned 128-wide slice adds
    (pure VALU; avoids per-step XLU cross-lane reductions and narrow stores)."""
    parts = [v[:, j * 128:(j + 1) * 128] for j in range(k)]
    while len(parts) > 1:
        nxt = [parts[a] + parts[a + 1] for a in range(0, len(parts) - 1, 2)]
        if len(parts) % 2:
            nxt.append(parts[-1])
        parts = nxt
    return parts[0]


def dice_focal_kernel(x_ref, t_ref, inter_ref, ground_ref, pred_ref, focal_ref,
                      *, n_valid, tn, steps_per_core, gamma):
    core = pl.program_id(0)     # "parallel" axis (megacore on v7x)
    step = pl.program_id(1)     # "arbitrary" streaming axis

    @pl.when(step == 0)
    def _init():
        inter_ref[...] = jnp.zeros_like(inter_ref)
        ground_ref[...] = jnp.zeros_like(ground_ref)
        pred_ref[...] = jnp.zeros_like(pred_ref)
        focal_ref[...] = jnp.zeros_like(focal_ref)

    rows = x_ref.shape[0]
    # Tail-lane / duplicate-block mask based on the *unclamped* global offset.
    start = (core * steps_per_core + step) * tn
    col = lax.broadcasted_iota(jnp.int32, (1, tn), 1)
    valid = (col + start) < n_valid                     # (1, tn), broadcasts over rows

    x = x_ref[...].astype(jnp.float32)                  # (rows, tn) logits
    t = jnp.where(valid, t_ref[...].astype(jnp.float32), 0.0)   # masked binary targets

    # Shared transcendentals: one exp + one log1p (+ one EUP reciprocal) per element.
    x_abs = jnp.abs(x)
    e = jnp.exp(-x_abs)                                 # exp(-|x|)
    softplus = jnp.log1p(e)                             # log(1 + exp(-|x|))
    inv1pe = pl.reciprocal(1.0 + e, approx=APPROX_RECIPROCAL)
    p = jnp.where(valid, jnp.where(x >= 0.0, 1.0, e) * inv1pe, 0.0)   # sigmoid, masked

    # BCE with logits (numerically stable).
    bce = jnp.maximum(x, 0.0) - x * t + softplus
    # Focal modulation (1 - p_t)^gamma; exact for hard binary targets.
    pt1 = jnp.where(t > 0.5, 1.0 - p, p)
    if gamma == 2.0:
        mod = pt1 * pt1
    else:
        invprobs = jnp.minimum(-x * (2.0 * t - 1.0), 0.0) - softplus  # logsigmoid
        mod = jnp.exp(gamma * invprobs)
    fl = jnp.where(valid, mod * bce, 0.0)               # mask guards NaN/garbage pad lanes

    # Per-row, per-128-lane partial sums accumulated in the resident output block.
    k = tn // 128
    inter_ref[...] += _lane_tree_sum(t * p, k)
    ground_ref[...] += _lane_tree_sum(t, k)
    pred_ref[...] += _lane_tree_sum(p, k)
    focal_ref[...] += _lane_tree_sum(fl, k)


def dice_focal_loss(y_pred, y, weights=CLASS_WEIGHTS, gamma=GAMMA):
    """y_pred, y: NCHW arrays (logits / hard binary targets). Returns scalar f32 loss."""
    B, C, H, W = y_pred.shape
    N = H * W
    BC = B * C

    # Pure adjacent-dim reshapes (no transpose, no extra HBM pass). Fold a factor
    # of 2 of the spatial axis into the row dim when possible so bf16 blocks fill
    # 16-sublane packed vregs.
    fold = 2 if N % 2 == 0 else 1
    rows = BC * fold
    n2 = N // fold

    x2 = y_pred.reshape(rows, n2)
    # Targets streamed as bf16 (exact for {0,1} labels) to halve their HBM bytes.
    t2 = y.reshape(rows, n2).astype(jnp.bfloat16)

    pair_itemsize = x2.dtype.itemsize + t2.dtype.itemsize
    tn = _pick_tile(n2, rows, pair_itemsize)
    nb = pl.cdiv(n2, tn)                 # total lane blocks (cdiv + in-kernel mask)
    spc = pl.cdiv(nb, NUM_CORES)         # steps per core (contiguous half each)

    def in_map(c, i):
        # Clamp the (at most one) duplicated tail block; its contribution is
        # masked to zero inside the kernel.
        return (0, jnp.minimum(c * spc + i, nb - 1))

    kernel = functools.partial(
        dice_focal_kernel, n_valid=n2, tn=tn, steps_per_core=spc, gamma=gamma)

    stat = jax.ShapeDtypeStruct((NUM_CORES, rows, 128), jnp.float32)
    inter, ground, pred, focal = pl.pallas_call(
        kernel,
        out_shape=(stat, stat, stat, stat),
        grid_spec=pltpu.PrefetchScalarGridSpec(
            num_scalar_prefetch=0,
            grid=(NUM_CORES, spc),
            in_specs=[
                pl.BlockSpec((rows, tn), in_map),
                pl.BlockSpec((rows, tn), in_map),
            ],
            out_specs=[
                pl.BlockSpec((None, rows, 128), lambda c, i: (c, 0, 0))
                for _ in range(4)
            ],
        ),
        compiler_params=pltpu.CompilerParams(
            dimension_semantics=("parallel", "arbitrary"),
            vmem_limit_bytes=40 * 1024 * 1024,
        ),
    )(x2, t2)

    # Epilogue in plain JAX (O(C) work): fold cores / batch / spatial-fold / lanes.
    def per_class(a):                    # (NUM_CORES, B*C*fold, 128) -> (C,)
        return a.reshape(NUM_CORES, B, C, fold, 128).sum(axis=(0, 1, 3, 4))

    inter_c, ground_c, pred_c, focal_c = map(per_class, (inter, ground, pred, focal))

    # Dice (batch=True): reduce over batch+spatial, per-class dice, mean over classes.
    dice_c = 1.0 - (2.0 * inter_c + SMOOTH_NR) / (ground_c + pred_c + SMOOTH_DR)
    dice_loss = jnp.mean(dice_c)

    # Focal (reduction='mean', per-class weight applied to elementwise loss).
    w = jnp.asarray(weights, jnp.float32)
    focal_loss = jnp.sum(focal_c * w) / (B * C * N)

    return dice_loss + focal_loss        # lambda_dice = lambda_focal = 1.0


if __name__ == "__main__":
    key = jax.random.PRNGKey(0)
    k1, k2 = jax.random.split(key)
    B, C, H, W = 2, 4, 16, 16
    # logits for predictions, hard binary {0,1} targets (include_background=True)
    y_pred = jax.random.normal(k1, (B, C, H, W), dtype=jnp.float32)
    y = jax.random.bernoulli(k2, p=0.3, shape=(B, C, H, W)).astype(jnp.float32)

    loss = dice_focal_loss(y_pred, y)
    loss = jax.block_until_ready(loss)
    assert loss.shape == () and bool(jnp.isfinite(loss))
    print("KERNEL_OK")
</pallas_src>

<mosaic_0001>
module attributes {stable_mosaic.version = 11 : i64} {
  func.func @dice_focal_kernel(%arg0: i32, %arg1: i32, %arg2: memref<16x128xf32, #tpu.memory_space<vmem>>, %arg3: memref<16x128xbf16, #tpu.memory_space<vmem>>, %arg4: memref<1x16x128xf32, #tpu.memory_space<vmem>>, %arg5: memref<1x16x128xf32, #tpu.memory_space<vmem>>, %arg6: memref<1x16x128xf32, #tpu.memory_space<vmem>>, %arg7: memref<1x16x128xf32, #tpu.memory_space<vmem>>) attributes {dimension_semantics = [#tpu.dimension_semantics<parallel>, #tpu.dimension_semantics<arbitrary>], iteration_bounds = array<i64: 2, 1>, scalar_prefetch = 0 : i64, scratch_operands = 0 : i64, tpu.core_type = #tpu.core_type<tc>, window_params = [{transform_indices = @transform_0, window_bounds = array<i64: 16, 128>}, {transform_indices = @transform_1, window_bounds = array<i64: 16, 128>}, {transform_indices = @transform_2, window_bounds = array<i64: 1, 16, 128>}, {transform_indices = @transform_3, window_bounds = array<i64: 1, 16, 128>}, {transform_indices = @transform_4, window_bounds = array<i64: 1, 16, 128>}, {transform_indices = @transform_5, window_bounds = array<i64: 1, 16, 128>}]} {
    %c0_i32 = arith.constant 0 : i32
    %0 = arith.cmpi eq, %arg1, %c0_i32 : i32
    %1 = arith.extui %0 : i1 to i32
    %c0_i32_0 = arith.constant 0 : i32
    %2 = arith.cmpi ne, %1, %c0_i32_0 : i32
    scf.if %2 {
      %cst_38 = arith.constant 0.000000e+00 : f32
      %76 = vector.broadcast %cst_38 : f32 to vector<16x128xf32>
      %c0_39 = arith.constant 0 : index
      %c0_40 = arith.constant 0 : index
      %c0_41 = arith.constant 0 : index
      %77 = vector.load %arg4[%c0_39, %c0_40, %c0_41] : memref<1x16x128xf32, #tpu.memory_space<vmem>>, vector<1x16x128xf32>
      %78 = vector.shape_cast %77 : vector<1x16x128xf32> to vector<16x128xf32>
      %79 = vector.shape_cast %76 : vector<16x128xf32> to vector<1x16x128xf32>
      tpu.vector_store %arg4[%c0_39, %c0_40, %c0_41], %79 {strides = array<i32>} : memref<1x16x128xf32, #tpu.memory_space<vmem>>, vector<1x16x128xf32>,
      %cst_42 = arith.constant 0.000000e+00 : f32
      %80 = vector.broadcast %cst_42 : f32 to vector<16x128xf32>
      %c0_43 = arith.constant 0 : index
      %c0_44 = arith.constant 0 : index
      %c0_45 = arith.constant 0 : index
      %81 = vector.load %arg5[%c0_43, %c0_44, %c0_45] : memref<1x16x128xf32, #tpu.memory_space<vmem>>, vector<1x16x128xf32>
      %82 = vector.shape_cast %81 : vector<1x16x128xf32> to vector<16x128xf32>
      %83 = vector.shape_cast %80 : vector<16x128xf32> to vector<1x16x128xf32>
      tpu.vector_store %arg5[%c0_43, %c0_44, %c0_45], %83 {strides = array<i32>} : memref<1x16x128xf32, #tpu.memory_space<vmem>>, vector<1x16x128xf32>,
      %cst_46 = arith.constant 0.000000e+00 : f32
      %84 = vector.broadcast %cst_46 : f32 to vector<16x128xf32>
      %c0_47 = arith.constant 0 : index
      %c0_48 = arith.constant 0 : index
      %c0_49 = arith.constant 0 : index
      %85 = vector.load %arg6[%c0_47, %c0_48, %c0_49] : memref<1x16x128xf32, #tpu.memory_space<vmem>>, vector<1x16x128xf32>
      %86 = vector.shape_cast %85 : vector<1x16x128xf32> to vector<16x128xf32>
      %87 = vector.shape_cast %84 : vector<16x128xf32> to vector<1x16x128xf32>
      tpu.vector_store %arg6[%c0_47, %c0_48, %c0_49], %87 {strides = array<i32>} : memref<1x16x128xf32, #tpu.memory_space<vmem>>, vector<1x16x128xf32>,
      %cst_50 = arith.constant 0.000000e+00 : f32
      %88 = vector.broadcast %cst_50 : f32 to vector<16x128xf32>
      %c0_51 = arith.constant 0 : index
      %c0_52 = arith.constant 0 : index
      %c0_53 = arith.constant 0 : index
      %89 = vector.load %arg7[%c0_51, %c0_52, %c0_53] : memref<1x16x128xf32, #tpu.memory_space<vmem>>, vector<1x16x128xf32>
      %90 = vector.shape_cast %89 : vector<1x16x128xf32> to vector<16x128xf32>
      %91 = vector.shape_cast %88 : vector<16x128xf32> to vector<1x16x128xf32>
      tpu.vector_store %arg7[%c0_51, %c0_52, %c0_53], %91 {strides = array<i32>} : memref<1x16x128xf32, #tpu.memory_space<vmem>>, vector<1x16x128xf32>,
    } else {
    }
    %c1_i32 = arith.constant 1 : i32
    %3 = arith.muli %arg0, %c1_i32 : i32
    %4 = arith.addi %3, %arg1 : i32
    %c128_i32 = arith.constant 128 : i32
    %5 = arith.muli %4, %c128_i32 : i32
    %6 = tpu.iota {dimensions = array<i32: 1>} : vector<1x128xi32>
    %7 = vector.broadcast %5 : i32 to vector<1x128xi32>
    %8 = arith.addi %6, %7 : vector<1x128xi32>
    %c128_i32_1 = arith.constant 128 : i32
    %9 = vector.broadcast %c128_i32_1 : i32 to vector<1x128xi32>
    %10 = arith.cmpi slt, %8, %9 : vector<1x128xi32>
    %c0 = arith.constant 0 : index
    %c0_2 = arith.constant 0 : index
    %11 = vector.load %arg2[%c0, %c0_2] : memref<16x128xf32, #tpu.memory_space<vmem>>, vector<16x128xf32>
    %c0_3 = arith.constant 0 : index
    %c0_4 = arith.constant 0 : index
    %12 = vector.load %arg3[%c0_3, %c0_4] : memref<16x128xbf16, #tpu.memory_space<vmem>>, vector<16x128xbf16>
    %13 = arith.extf %12 : vector<16x128xbf16> to vector<16x128xf32>
    %cst = arith.constant 0.000000e+00 : f32
    %14 = vector.shape_cast %10 : vector<1x128xi1> to vector<1x128xi1>
    %15 = vector.broadcast %14 : vector<1x128xi1> to vector<16x128xi1>
    %16 = vector.broadcast %cst : f32 to vector<16x128xf32>
    %17 = arith.select %15, %13, %16 : vector<16x128xi1>, vector<16x128xf32>
    %18 = math.absf %11 : vector<16x128xf32>
    %cst_5 = arith.constant 0.000000e+00 : f32
    %19 = vector.broadcast %cst_5 : f32 to vector<16x128xf32>
    %20 = arith.subf %19, %18 : vector<16x128xf32>
    %21 = math.exp %20 : vector<16x128xf32>
    %22 = math.log1p %21 : vector<16x128xf32>
    %cst_6 = arith.constant 1.000000e+00 : f32
    %23 = vector.broadcast %cst_6 : f32 to vector<16x128xf32>
    %24 = arith.addf %23, %21 : vector<16x128xf32>
    %25 = tpu.reciprocal %24 {approx = true} : vector<16x128xf32> -> vector<16x128xf32>
    %cst_7 = arith.constant 0.000000e+00 : f32
    %26 = vector.broadcast %cst_7 : f32 to vector<16x128xf32>
    %27 = arith.cmpf oge, %11, %26 : vector<16x128xf32>
    %cst_8 = arith.constant 1.000000e+00 : f32
    %28 = vector.broadcast %cst_8 : f32 to vector<16x128xf32>
    %29 = arith.select %27, %28, %21 : vector<16x128xi1>, vector<16x128xf32>
    %30 = arith.mulf %29, %25 : vector<16x128xf32>
    %cst_9 = arith.constant 0.000000e+00 : f32
    %31 = vector.shape_cast %10 : vector<1x128xi1> to vector<1x128xi1>
    %32 = vector.broadcast %31 : vector<1x128xi1> to vector<16x128xi1>
    %33 = vector.broadcast %cst_9 : f32 to vector<16x128xf32>
    %34 = arith.select %32, %30, %33 : vector<16x128xi1>, vector<16x128xf32>
    %cst_10 = arith.constant 0.000000e+00 : f32
    %35 = vector.broadcast %cst_10 : f32 to vector<16x128xf32>
    %36 = arith.maximumf %11, %35 : vector<16x128xf32>
    %37 = arith.mulf %11, %17 : vector<16x128xf32>
    %38 = arith.subf %36, %37 : vector<16x128xf32>
    %39 = arith.addf %38, %22 : vector<16x128xf32>
    %cst_11 = arith.constant 5.000000e-01 : f32
    %40 = vector.broadcast %cst_11 : f32 to vector<16x128xf32>
    %41 = arith.cmpf ogt, %17, %40 : vector<16x128xf32>
    %cst_12 = arith.constant 1.000000e+00 : f32
    %42 = vector.broadcast %cst_12 : f32 to vector<16x128xf32>
    %43 = arith.subf %42, %34 : vector<16x128xf32>
    %44 = arith.select %41, %43, %34 : vector<16x128xi1>, vector<16x128xf32>
    %45 = arith.mulf %44, %44 : vector<16x128xf32>
    %46 = arith.mulf %45, %39 : vector<16x128xf32>
    %cst_13 = arith.constant 0.000000e+00 : f32
    %47 = vector.shape_cast %10 : vector<1x128xi1> to vector<1x128xi1>
    %48 = vector.broadcast %47 : vector<1x128xi1> to vector<16x128xi1>
    %49 = vector.broadcast %cst_13 : f32 to vector<16x128xf32>
    %50 = arith.select %48, %46, %49 : vector<16x128xi1>, vector<16x128xf32>
    %c0_14 = arith.constant 0 : index
    %c0_15 = arith.constant 0 : index
    %c0_16 = arith.constant 0 : index
    %51 = vector.load %arg4[%c0_14, %c0_15, %c0_16] : memref<1x16x128xf32, #tpu.memory_space<vmem>>, vector<1x16x128xf32>
    %52 = vector.shape_cast %51 : vector<1x16x128xf32> to vector<16x128xf32>
    %53 = arith.mulf %17, %34 : vector<16x128xf32>
    %54 = arith.addf %52, %53 : vector<16x128xf32>
    %c0_17 = arith.constant 0 : index
    %c0_18 = arith.constant 0 : index
    %c0_19 = arith.constant 0 : index
    %55 = vector.load %arg4[%c0_17, %c0_18, %c0_19] : memref<1x16x128xf32, #tpu.memory_space<vmem>>, vector<1x16x128xf32>
    %56 = vector.shape_cast %55 : vector<1x16x128xf32> to vector<16x128xf32>
    %57 = vector.shape_cast %54 : vector<16x128xf32> to vector<1x16x128xf32>
    tpu.vector_store %arg4[%c0_17, %c0_18, %c0_19], %57 {strides = array<i32>} : memref<1x16x128xf32, #tpu.memory_space<vmem>>, vector<1x16x128xf32>,
    %c0_20 = arith.constant 0 : index
    %c0_21 = arith.constant 0 : index
    %c0_22 = arith.constant 0 : index
    %58 = vector.load %arg5[%c0_20, %c0_21, %c0_22] : memref<1x16x128xf32, #tpu.memory_space<vmem>>, vector<1x16x128xf32>
    %59 = vector.shape_cast %58 : vector<1x16x128xf32> to vector<16x128xf32>
    %60 = arith.addf %59, %17 : vector<16x128xf32>
    %c0_23 = arith.constant 0 : index
    %c0_24 = arith.constant 0 : index
    %c0_25 = arith.constant 0 : index
    %61 = vector.load %arg5[%c0_23, %c0_24, %c0_25] : memref<1x16x128xf32, #tpu.memory_space<vmem>>, vector<1x16x128xf32>
    %62 = vector.shape_cast %61 : vector<1x16x128xf32> to vector<16x128xf32>
    %63 = vector.shape_cast %60 : vector<16x128xf32> to vector<1x16x128xf32>
    tpu.vector_store %arg5[%c0_23, %c0_24, %c0_25], %63 {strides = array<i32>} : memref<1x16x128xf32, #tpu.memory_space<vmem>>, vector<1x16x128xf32>,
    %c0_26 = arith.constant 0 : index
    %c0_27 = arith.constant 0 : index
    %c0_28 = arith.constant 0 : index
    %64 = vector.load %arg6[%c0_26, %c0_27, %c0_28] : memref<1x16x128xf32, #tpu.memory_space<vmem>>, vector<1x16x128xf32>
    %65 = vector.shape_cast %64 : vector<1x16x128xf32> to vector<16x128xf32>
    %66 = arith.addf %65, %34 : vector<16x128xf32>
    %c0_29 = arith.constant 0 : index
    %c0_30 = arith.constant 0 : index
    %c0_31 = arith.constant 0 : index
    %67 = vector.load %arg6[%c0_29, %c0_30, %c0_31] : memref<1x16x128xf32, #tpu.memory_space<vmem>>, vector<1x16x128xf32>
    %68 = vector.shape_cast %67 : vector<1x16x128xf32> to vector<16x128xf32>
    %69 = vector.shape_cast %66 : vector<16x128xf32> to vector<1x16x128xf32>
    tpu.vector_store %arg6[%c0_29, %c0_30, %c0_31], %69 {strides = array<i32>} : memref<1x16x128xf32, #tpu.memory_space<vmem>>, vector<1x16x128xf32>,
    %c0_32 = arith.constant 0 : index
    %c0_33 = arith.constant 0 : index
    %c0_34 = arith.constant 0 : index
    %70 = vector.load %arg7[%c0_32, %c0_33, %c0_34] : memref<1x16x128xf32, #tpu.memory_space<vmem>>, vector<1x16x128xf32>
    %71 = vector.shape_cast %70 : vector<1x16x128xf32> to vector<16x128xf32>
    %72 = arith.addf %71, %50 : vector<16x128xf32>
    %c0_35 = arith.constant 0 : index
    %c0_36 = arith.constant 0 : index
    %c0_37 = arith.constant 0 : index
    %73 = vector.load %arg7[%c0_35, %c0_36, %c0_37] : memref<1x16x128xf32, #tpu.memory_space<vmem>>, vector<1x16x128xf32>
    %74 = vector.shape_cast %73 : vector<1x16x128xf32> to vector<16x128xf32>
    %75 = vector.shape_cast %72 : vector<16x128xf32> to vector<1x16x128xf32>
    tpu.vector_store %arg7[%c0_35, %c0_36, %c0_37], %75 {strides = array<i32>} : memref<1x16x128xf32, #tpu.memory_space<vmem>>, vector<1x16x128xf32>,
    return
  }
  func.func @transform_0(%arg0: i32, %arg1: i32) -> (i32, i32) {
    %c1_i32 = arith.constant 1 : i32
    %0 = arith.muli %arg0, %c1_i32 : i32
    %1 = arith.addi %0, %arg1 : i32
    %c0_i32 = arith.constant 0 : i32
    %2 = arith.minsi %1, %c0_i32 : i32
    %c0_i32_0 = arith.constant 0 : i32
    %c0_i32_1 = arith.constant 0 : i32
    return %c0_i32_0, %2 : i32, i32
  }
  func.func @transform_1(%arg0: i32, %arg1: i32) -> (i32, i32) {
    %c1_i32 = arith.constant 1 : i32
    %0 = arith.muli %arg0, %c1_i32 : i32
    %1 = arith.addi %0, %arg1 : i32
    %c0_i32 = arith.constant 0 : i32
    %2 = arith.minsi %1, %c0_i32 : i32
    %c0_i32_0 = arith.constant 0 : i32
    %c0_i32_1 = arith.constant 0 : i32
    return %c0_i32_0, %2 : i32, i32
  }
  func.func @transform_2(%arg0: i32, %arg1: i32) -> (i32, i32, i32) {
    %c0_i32 = arith.constant 0 : i32
    %c0_i32_0 = arith.constant 0 : i32
    %c0_i32_1 = arith.constant 0 : i32
    return %arg0, %c0_i32, %c0_i32_0 : i32, i32, i32
  }
  func.func @transform_3(%arg0: i32, %arg1: i32) -> (i32, i32, i32) {
    %c0_i32 = arith.constant 0 : i32
    %c0_i32_0 = arith.constant 0 : i32
    %c0_i32_1 = arith.constant 0 : i32
    return %arg0, %c0_i32, %c0_i32_0 : i32, i32, i32
  }
  func.func @transform_4(%arg0: i32, %arg1: i32) -> (i32, i32, i32) {
    %c0_i32 = arith.constant 0 : i32
    %c0_i32_0 = arith.constant 0 : i32
    %c0_i32_1 = arith.constant 0 : i32
    return %arg0, %c0_i32, %c0_i32_0 : i32, i32, i32
  }
  func.func @transform_5(%arg0: i32, %arg1: i32) -> (i32, i32, i32) {
    %c0_i32 = arith.constant 0 : i32
    %c0_i32_0 = arith.constant 0 : i32
    %c0_i32_1 = arith.constant 0 : i32
    return %arg0, %c0_i32, %c0_i32_0 : i32, i32, i32
  }
}

</mosaic_0001>

<llo_original>
// kernel: tpu_custom_call.1
$region0: #{tpu_custom_call.1}
  #allocation0 [shape = 'u32[]', space=smem, size = 0x4, offset = 0x4, fixed_abs, tag = 'smem constant byte address 0x4 - core index']
  #allocation1 [shape = 'u32[144,128]{1,0:T(1,128)}', space=vmem, size = 0x12000, scoped, tag = 'internal scratch']
  %s0 = inlined_call_operand.hbm [shape: f32[16,128], index: 0, kind: input, shape index: {}]
  %s1 = inlined_call_operand.hbm [shape: bf16[16,128], index: 1, kind: input, shape index: {}]
  %s2 = inlined_call_operand.hbm [shape: f32[2,16,128], index: 2, kind: output, shape index: {0}]
  %s3 = inlined_call_operand.hbm [shape: f32[2,16,128], index: 3, kind: output, shape index: {1}]
  %s4 = inlined_call_operand.hbm [shape: f32[2,16,128], index: 4, kind: output, shape index: {2}]
  %s5 = inlined_call_operand.hbm [shape: f32[2,16,128], index: 5, kind: output, shape index: {3}]
  %6 = xla_tuple %s2, %s3, %s4, %s5
  %s7 = sld [smem:[#allocation0]]
  $region77: #{tpu_custom_call.1} parent=0
    _
  %s9 = ssub.s32 1, %s7
  %s10 = scalar_select 0, %s9, %s7
  $region1: #{tpu_custom_call.1} parent=0
    #allocation2 [shape = 'u8[16384]{0}', space=vmem, size = 0x4000, scoped, tag = 'input window, operand 0']
    #allocation3 [shape = 's32[2]{0}', space=sflag, size = 0x8, scoped, tag = 'scoped memory for tpu_custom_call.1']
    #allocation4 [shape = 's32[2]{0}', space=sflag, size = 0x8, scoped, tag = 'scoped memory for tpu_custom_call.1']
    #allocation5 [shape = 'u8[8192]{0}', space=vmem, size = 0x2000, scoped, tag = 'input window, operand 1']
    #allocation6 [shape = 's32[2]{0}', space=sflag, size = 0x8, scoped, tag = 'scoped memory for tpu_custom_call.1']
    #allocation7 [shape = 'u8[16384]{0}', space=vmem, size = 0x4000, scoped, tag = 'output window, operand 0']
    #allocation8 [shape = 'u8[16384]{0}', space=vmem, size = 0x4000, scoped, tag = 'output window, operand 1']
    #allocation9 [shape = 's32[2]{0}', space=sflag, size = 0x8, scoped, tag = 'scoped memory for tpu_custom_call.1']
    #allocation10 [shape = 'u8[16384]{0}', space=vmem, size = 0x4000, scoped, tag = 'output window, operand 2']
    #allocation11 [shape = 'u8[16384]{0}', space=vmem, size = 0x4000, scoped, tag = 'output window, operand 3']
    #allocation12 [shape = 's32[2]{0}', space=sflag, size = 0x8, scoped, tag = 'scoped memory for tpu_custom_call.1']
    %11 = vsyncpa [#allocation3], 0
    %s12 = scalar_lea.sflag [#allocation3], 1
    %13 = vsyncpa %s12, 0
    %14 = vsyncpa [#allocation6], 0
    %s15 = scalar_lea.sflag [#allocation6], 1
    %16 = vsyncpa %s15, 0
    %17 = vsyncpa [#allocation4], 0
    %s18 = scalar_lea.sflag [#allocation4], 1
    %19 = vsyncpa %s18, 0
    %20 = vsyncpa [#allocation9], 0
    %s21 = scalar_lea.sflag [#allocation9], 1
    %22 = vsyncpa %s21, 0
    %23 = vsyncpa [#allocation12], 0
    %s24 = scalar_lea.sflag [#allocation12], 1
    %25 = vsyncpa %s24, 0
    loop: start=0, step=1, limit=4
    $region2: #{tpu_custom_call.1} parent=1 // loop_pre_header
      _
    $region3: #{tpu_custom_call.1} parent=1 // loop_header
      %s27 = sphi 0, %s31
      %p28 = scmp.ge.s32.totalorder %s27, 4
      %s34 = sphi 0, %s46
      %s35 = sphi 0, %s42
      %s36 = sphi 0, %s34
      %s37 = sphi 0, %s35
      %s38 = sphi 0, %s36
      %s39 = sphi 0, %s37
      %s55 = sphi 0, %s57
      %s58 = sphi 0, %s55
      %s59 = sphi 0, %s58
      %s75 = sphi 0, %s59
      %s87 = sphi 0, %s89
      %s90 = sphi 0, %s87
      %s91 = sphi 0, %s90
      %s107 = sphi 0, %s91
      %s113 = sphi 0, %s115
      %s116 = sphi 0, %s113
      %s117 = sphi 0, %s116
      %s133 = sphi 0, %s117
      %s139 = sphi 0, %s141
      %s142 = sphi 0, %s139
      %s143 = sphi 0, %s142
      %s159 = sphi 0, %s143
      %s165 = sphi 0, %s167
      %s168 = sphi 0, %s165
      %s169 = sphi 0, %s168
      %s185 = sphi 0, %s169
      %s191 = sphi 0, %s193
      %s194 = sphi 0, %s191
      %s195 = sphi 0, %s194
      %s211 = sphi 0, %s195
    $region4: #{tpu_custom_call.1} parent=1 // loop_header_branch
      %30 = sbr.rel (%p28) target = $region8
    $region5: #{tpu_custom_call.1} parent=1 // loop_body
      %s32 = ssub.s32 %s27, 1
      %s33 = ssub.s32 %s27, 2
      %s40 = sadd.s32 1, %s35
      %p41 = scmp.ge.s32.totalorder %s40, 1
      %s42 = scalar_select %p41, 0, %s40
      %s43 = sadd.s32 1, %s34
      %s44 = scalar_select %p41, %s43, %s34
      %p45 = scmp.ge.s32.totalorder %s44, 2
      %s46 = scalar_select %p45, 0, %s44
      %s47 = sadd.s32 %s34, %s35
      %p48 = scmp.lt.s32.totalorder %s47, 0
      %s49 = scalar_select %p48, %s47, 0
      %s50 = sadd.s32 %s46, %s42
      %p51 = scmp.lt.s32.totalorder %s50, 0
      %s52 = scalar_select %p51, %s50, 0
      %s53 = ssub.s32 %s49, %s52
      %p54 = scmp.eq.s32.totalorder %s53, 0
      %s56 = sadd.s32 %s55, 1
      %s57 = scalar_select %p54, %s55, %s56
      %p60 = pneg %p54
      %p61 = scmp.eq.s32.totalorder %s27, 1
      %p62 = por %p60, %p61
      %p63 = scmp.ne.s32.totalorder %s55, %s58
      %p64 = scmp.eq.s32.totalorder %s27, 0
      %p65 = por %p63, %p64
      %p66 = scmp.ne.s32.totalorder %s55, %s58
      %p67 = scmp.eq.s32.totalorder %s32, 1
      %p68 = por %p66, %p67
      %p69 = scmp.ne.s32.totalorder %s58, %s59
      %p70 = scmp.eq.s32.totalorder %s32, 0
      %p71 = por %p69, %p70
      %p72 = scmp.ne.s32.totalorder %s58, %s59
      %p73 = scmp.eq.s32.totalorder %s33, 1
      %p74 = por %p72, %p73
      %p76 = scmp.ne.s32.totalorder %s59, %s75
      %p77 = scmp.eq.s32.totalorder %s33, 0
      %p78 = por %p76, %p77
      %s79 = sadd.s32 %s34, %s35
      %p80 = scmp.lt.s32.totalorder %s79, 0
      %s81 = scalar_select %p80, %s79, 0
      %s82 = sadd.s32 %s46, %s42
      %p83 = scmp.lt.s32.totalorder %s82, 0
      %s84 = scalar_select %p83, %s82, 0
      %s85 = ssub.s32 %s81, %s84
      %p86 = scmp.eq.s32.totalorder %s85, 0
      %s88 = sadd.s32 %s87, 1
      %s89 = scalar_select %p86, %s87, %s88
      %p92 = pneg %p86
      %p93 = scmp.eq.s32.totalorder %s27, 1
      %p94 = por %p92, %p93
      %p95 = scmp.ne.s32.totalorder %s87, %s90
      %p96 = scmp.eq.s32.totalorder %s27, 0
      %p97 = por %p95, %p96
      %p98 = scmp.ne.s32.totalorder %s87, %s90
      %p99 = scmp.eq.s32.totalorder %s32, 1
      %p100 = por %p98, %p99
      %p101 = scmp.ne.s32.totalorder %s90, %s91
      %p102 = scmp.eq.s32.totalorder %s32, 0
      %p103 = por %p101, %p102
      %p104 = scmp.ne.s32.totalorder %s90, %s91
      %p105 = scmp.eq.s32.totalorder %s33, 1
      %p106 = por %p104, %p105
      %p108 = scmp.ne.s32.totalorder %s91, %s107
      %p109 = scmp.eq.s32.totalorder %s33, 0
      %p110 = por %p108, %p109
      %s111 = ssub.s32 %s34, %s46
      %p112 = scmp.eq.s32.totalorder %s111, 0
      %s114 = sadd.s32 %s113, 1
      %s115 = scalar_select %p112, %s113, %s114
      %p118 = pneg %p112
      %p119 = scmp.eq.s32.totalorder %s27, 1
      %p120 = por %p118, %p119
      %p121 = scmp.ne.s32.totalorder %s113, %s116
      %p122 = scmp.eq.s32.totalorder %s27, 0
      %p123 = por %p121, %p122
      %p124 = scmp.ne.s32.totalorder %s113, %s116
      %p125 = scmp.eq.s32.totalorder %s32, 1
      %p126 = por %p124, %p125
      %p127 = scmp.ne.s32.totalorder %s116, %s117
      %p128 = scmp.eq.s32.totalorder %s32, 0
      %p129 = por %p127, %p128
      %p130 = scmp.ne.s32.totalorder %s116, %s117
      %p131 = scmp.eq.s32.totalorder %s33, 1
      %p132 = por %p130, %p131
      %p134 = scmp.ne.s32.totalorder %s117, %s133
      %p135 = scmp.eq.s32.totalorder %s33, 0
      %p136 = por %p134, %p135
      %s137 = ssub.s32 %s34, %s46
      %p138 = scmp.eq.s32.totalorder %s137, 0
      %s140 = sadd.s32 %s139, 1
      %s141 = scalar_select %p138, %s139, %s140
      %p144 = pneg %p138
      %p145 = scmp.eq.s32.totalorder %s27, 1
      %p146 = por %p144, %p145
      %p147 = scmp.ne.s32.totalorder %s139, %s142
      %p148 = scmp.eq.s32.totalorder %s27, 0
      %p149 = por %p147, %p148
      %p150 = scmp.ne.s32.totalorder %s139, %s142
      %p151 = scmp.eq.s32.totalorder %s32, 1
      %p152 = por %p150, %p151
      %p153 = scmp.ne.s32.totalorder %s142, %s143
      %p154 = scmp.eq.s32.totalorder %s32, 0
      %p155 = por %p153, %p154
      %p156 = scmp.ne.s32.totalorder %s142, %s143
      %p157 = scmp.eq.s32.totalorder %s33, 1
      %p158 = por %p156, %p157
      %p160 = scmp.ne.s32.totalorder %s143, %s159
      %p161 = scmp.eq.s32.totalorder %s33, 0
      %p162 = por %p160, %p161
      %s163 = ssub.s32 %s34, %s46
      %p164 = scmp.eq.s32.totalorder %s163, 0
      %s166 = sadd.s32 %s165, 1
      %s167 = scalar_select %p164, %s165, %s166
      %p170 = pneg %p164
      %p171 = scmp.eq.s32.totalorder %s27, 1
      %p172 = por %p170, %p171
      %p173 = scmp.ne.s32.totalorder %s165, %s168
      %p174 = scmp.eq.s32.totalorder %s27, 0
      %p175 = por %p173, %p174
      %p176 = scmp.ne.s32.totalorder %s165, %s168
      %p177 = scmp.eq.s32.totalorder %s32, 1
      %p178 = por %p176, %p177
      %p179 = scmp.ne.s32.totalorder %s168, %s169
      %p180 = scmp.eq.s32.totalorder %s32, 0
      %p181 = por %p179, %p180
      %p182 = scmp.ne.s32.totalorder %s168, %s169
      %p183 = scmp.eq.s32.totalorder %s33, 1
      %p184 = por %p182, %p183
      %p186 = scmp.ne.s32.totalorder %s169, %s185
      %p187 = scmp.eq.s32.totalorder %s33, 0
      %p188 = por %p186, %p187
      %s189 = ssub.s32 %s34, %s46
      %p190 = scmp.eq.s32.totalorder %s189, 0
      %s192 = sadd.s32 %s191, 1
      %s193 = scalar_select %p190, %s191, %s192
      %p196 = pneg %p190
      %p197 = scmp.eq.s32.totalorder %s27, 1
      %p198 = por %p196, %p197
      %p199 = scmp.ne.s32.totalorder %s191, %s194
      %p200 = scmp.eq.s32.totalorder %s27, 0
      %p201 = por %p199, %p200
      %p202 = scmp.ne.s32.totalorder %s191, %s194
      %p203 = scmp.eq.s32.totalorder %s32, 1
      %p204 = por %p202, %p203
      %p205 = scmp.ne.s32.totalorder %s194, %s195
      %p206 = scmp.eq.s32.totalorder %s32, 0
      %p207 = por %p205, %p206
      %p208 = scmp.ne.s32.totalorder %s194, %s195
      %p209 = scmp.eq.s32.totalorder %s33, 1
      %p210 = por %p208, %p209
      %p212 = scmp.ne.s32.totalorder %s195, %s211
      %p213 = scmp.eq.s32.totalorder %s33, 0
      %p214 = por %p212, %p213
      %p215 = scmp.le.s32.totalorder 1, %s27
      %p216 = scmp.lt.s32.totalorder %s27, 3
      %p217 = pnand %p215, %p216
      %p218 = pneg %p217
      // Predicated region
      $region9: #{tpu_custom_call.1} parent=5 // pred_check
        _
      $region10: #{tpu_custom_call.1} parent=5 // pred_check_branch
        %220 = sbr.rel (%p217) target = $region12
      $region11: #{tpu_custom_call.1} parent=5 // pred_region
        %s221 = ssub.s32 %s27, 1
      $region12: #{tpu_custom_call.1} parent=5 // pred_fallthru
        _
      %p222 = scmp.lt.s32.totalorder %s27, 2
      // Predicated region
      $region13: #{tpu_custom_call.1} parent=5 // pred_check
        %p223 = pneg %p222
      $region14: #{tpu_custom_call.1} parent=5 // pred_check_branch
        %225 = sbr.rel (%p223) target = $region16
      $region15: #{tpu_custom_call.1} parent=5 // pred_region
        // Predicated region
        $region17: #{tpu_custom_call.1} parent=15 // pred_check
          %p226 = pneg %p65
        $region18: #{tpu_custom_call.1} parent=15 // pred_check_branch
          %228 = sbr.rel (%p226) target = $region20
        $region19: #{tpu_custom_call.1} parent=15 // pred_region
          %s229 = sand.u32 %s55, 1
          %s230 = scalar_lea.sflag [#allocation3], %s229
          %s231 = sand.u32 %s55, 1
          %s232 = smul.addr %s231, 16
          %s233 = scalar_lea.vmem [#allocation2], %s232
          %s234 = sadd.s32 %s34, %s35
          %p235 = scmp.lt.s32.totalorder %s234, 0
          %s236 = scalar_select %p235, %s234, 0
          %s238 = ssub.s32 256, 256
          %239 = vsyncadd %s230, %s238
          %s240 = smul.addr %s236, 128
          %s241 = scalar_lea.hbm %s0, %s240
          %s242 = sshll.u32 %s233, 4
          %s243 = int_to_ptr.vmem [resolvable:$true] %s242
          %248 = dma.hbm_to_vmem [thread:$0]  %s241, 256, %s243, %s230, 128, 128, 8
        $region20: #{tpu_custom_call.1} parent=15 // pred_fallthru
          _
        // Predicated region
        $region21: #{tpu_custom_call.1} parent=15 // pred_check
          %p249 = pneg %p97
        $region22: #{tpu_custom_call.1} parent=15 // pred_check_branch
          %251 = sbr.rel (%p249) target = $region24
        $region23: #{tpu_custom_call.1} parent=15 // pred_region
          %s252 = sand.u32 %s87, 1
          %s253 = scalar_lea.sflag [#allocation6], %s252
          %s254 = sand.u32 %s87, 1
          %s255 = smul.addr %s254, 8
          %s256 = scalar_lea.vmem [#allocation5], %s255
          %s257 = sadd.s32 %s34, %s35
          %p258 = scmp.lt.s32.totalorder %s257, 0
          %s259 = scalar_select %p258, %s257, 0
          %s261 = ssub.s32 128, 128
          %262 = vsyncadd %s253, %s261
          %s263 = smul.addr %s259, 64
          %s264 = scalar_lea.hbm %s1, %s263
          %s265 = sshll.u32 %s256, 4
          %s266 = int_to_ptr.vmem [resolvable:$true] %s265
          %271 = dma.hbm_to_vmem [thread:$0]  %s264, 128, %s266, %s253, 64, 64, 4
        $region24: #{tpu_custom_call.1} parent=15 // pred_fallthru
          _
      $region16: #{tpu_custom_call.1} parent=5 // pred_fallthru
        _
      %p272 = scmp.le.s32.totalorder 1, %s27
      %p273 = scmp.lt.s32.totalorder %s27, 3
      %p274 = pnand %p272, %p273
      %p275 = pneg %p274
      // Predicated region
      $region25: #{tpu_custom_call.1} parent=5 // pred_check
        _
      $region26: #{tpu_custom_call.1} parent=5 // pred_check_branch
        %277 = sbr.rel (%p274) target = $region28
      $region27: #{tpu_custom_call.1} parent=5 // pred_region
        %s278 = ssub.s32 %s27, 1
        %s279 = sand.u32 %s58, 1
        %s280 = scalar_lea.sflag [#allocation3], %s279
        %s281 = sand.u32 %s58, 1
        %s282 = smul.addr %s281, 16
        %s283 = scalar_lea.vmem [#allocation2], %s282
        // Predicated region
        $region29: #{tpu_custom_call.1} parent=27 // pred_check
          %p284 = pneg %p71
        $region30: #{tpu_custom_call.1} parent=27 // pred_check_branch
          %286 = sbr.rel (%p284) target = $region32
        $region31: #{tpu_custom_call.1} parent=27 // pred_region
          %287 = dma.done %s280, 256
        $region32: #{tpu_custom_call.1} parent=27 // pred_fallthru
          _
        %s288 = sand.u32 %s90, 1
        %s289 = scalar_lea.sflag [#allocation6], %s288
        %s290 = sand.u32 %s90, 1
        %s291 = smul.addr %s290, 8
        %s292 = scalar_lea.vmem [#allocation5], %s291
        // Predicated region
        $region33: #{tpu_custom_call.1} parent=27 // pred_check
          %p293 = pneg %p103
        $region34: #{tpu_custom_call.1} parent=27 // pred_check_branch
          %295 = sbr.rel (%p293) target = $region36
        $region35: #{tpu_custom_call.1} parent=27 // pred_region
          %296 = dma.done %s289, 128
        $region36: #{tpu_custom_call.1} parent=27 // pred_fallthru
          _
        %s297 = sand.u32 %s58, 1
        %s298 = scalar_lea.sflag [#allocation3], %s297
        %s299 = sand.u32 %s58, 1
        %s300 = smul.addr %s299, 16
        %s301 = scalar_lea.vmem [#allocation2], %s300
        %p302 = pneg %p71
        %p303 = pneg %p68
        %s304 = sand.u32 %s90, 1
        %s305 = scalar_lea.sflag [#allocation6], %s304
        %s306 = sand.u32 %s90, 1
        %s307 = smul.addr %s306, 8
        %s308 = scalar_lea.vmem [#allocation5], %s307
        %p309 = pneg %p103
        %p310 = pneg %p100
        %p311 = pneg %p129
        %p312 = pneg %p126
        %s313 = sand.u32 %s116, 1
        %s314 = scalar_lea.sflag [#allocation4], %s313
        %s315 = sand.u32 %s116, 1
        %s316 = smul.addr %s315, 16
        %s317 = scalar_lea.vmem [#allocation7], %s316
        %p318 = pneg %p155
        %p319 = pneg %p152
        %s320 = sand.u32 %s32, 1
        %s321 = scalar_lea.sflag [#allocation9], %s320
        %s322 = sand.u32 %s142, 1
        %s323 = smul.addr %s322, 16
        %s324 = scalar_lea.vmem [#allocation8], %s323
        %p325 = pneg %p181
        %p326 = pneg %p178
        %s327 = sand.u32 %s32, 1
        %s328 = scalar_lea.sflag [#allocation9], %s327
        %s329 = sand.u32 %s168, 1
        %s330 = smul.addr %s329, 16
        %s331 = scalar_lea.vmem [#allocation10], %s330
        %p332 = pneg %p207
        %p333 = pneg %p204
        %s334 = sand.u32 %s194, 1
        %s335 = scalar_lea.sflag [#allocation12], %s334
        %s336 = sand.u32 %s194, 1
        %s337 = smul.addr %s336, 16
        %s338 = scalar_lea.vmem [#allocation11], %s337
        %s339 = sadd.s32 %s36, %s37
        %p340 = scmp.lt.s32.totalorder %s339, 0
        %s341 = scalar_select %p340, %s339, 0
        %s342 = sadd.s32 %s36, %s37
        %p343 = scmp.lt.s32.totalorder %s342, 0
        %s344 = scalar_select %p343, %s342, 0
        %p345 = scmp.eq.s32.totalorder %s37, 0
        // Predicated region
        $region37: #{tpu_custom_call.1} parent=27 // pred_check
          %p346 = pneg %p345
        $region38: #{tpu_custom_call.1} parent=27 // pred_check_branch
          %348 = sbr.rel (%p346) target = $region40
        $region39: #{tpu_custom_call.1} parent=27 // pred_region
          %349 = vst [vmem:[%s317] sm:$0xff] 0.0
          %350 = vst [vmem:[%s317 + $0x8] sm:$0xff] 0.0
          %351 = vst [vmem:[%s324] sm:$0xff] 0.0
          %352 = vst [vmem:[%s324 + $0x8] sm:$0xff] 0.0
          %353 = vst [vmem:[%s331] sm:$0xff] 0.0
          %354 = vst [vmem:[%s331 + $0x8] sm:$0xff] 0.0
          %355 = vst [vmem:[%s338] sm:$0xff] 0.0
          %356 = vst [vmem:[%s338 + $0x8] sm:$0xff] 0.0
        $region40: #{tpu_custom_call.1} parent=27 // pred_fallthru
          _
        %s357 = sadd.s32 %s36, %s37
        %s358 = smul.u32 %s357, 128
        %v359 = vlaneseq
        %v360 = vand.u32 %v359, 127
        %v361 = vstv %s358
        %v362 = vadd.s32 %v360, %v361
        %vm363 = vcmp.lt.s32.totalorder %v362, 128
        %v364 = vld [vmem:[%s283] sm:$0xff]
        %v365 = vld [vmem:[%s283 + $0x8] sm:$0xff]
        %v366 = vld [vmem:[%s292] sm:$0xf]
        %v367 = vld [vmem:[%s292 + $0x4] sm:$0xf]
        %v368 = vunpack.c.l.bf16 %v366
        %v369 = vunpack.c.l.bf16 %v367
        %v370 = vsel %vm363, 1, 0
        %vm371 = vcmp.eq.s32.totalorder %v370, 1
        %v372 = vsel %vm371, %v368, 0.0
        %v373 = vsel %vm371, %v369, 0.0
        %v374 = vand.u32 2147483647, %v364
        %v375 = vand.u32 2147483647, %v365
        %v376 = vsub.f32 0.0, %v374
        %v377 = vsub.f32 0.0, %v375
        %v378 = vmul.f32 %v376, 1.442695
        %v379 = vpow.pop %v378
        %v380 = vmul.f32 %v377, 1.442695
        %v381 = vpow.pop %v380
        %v382 = vadd.f32 %v379, 1.0
        %v383 = vlog2.pop %v382
        %v384 = vmul.f32 %v383, 0.6931472
        %v385 = vmul.f32 -0.5, %v379
        %v386 = vadd.f32 %v385, 1.0
        %v387 = vmul.f32 %v386, %v379
        %v388 = vand.u32 2147483647, %v379
        %vm389 = vcmp.lt.f32.partialorder %v388, 0.0004427343
        %v390 = vsel %vm389, %v387, %v384
        %v391 = vadd.f32 %v381, 1.0
        %v392 = vlog2.pop %v391
        %v393 = vmul.f32 %v392, 0.6931472
        %v394 = vmul.f32 -0.5, %v381
        %v395 = vadd.f32 %v394, 1.0
        %v396 = vmul.f32 %v395, %v381
        %v397 = vand.u32 2147483647, %v381
        %vm398 = vcmp.lt.f32.partialorder %v397, 0.0004427343
        %v399 = vsel %vm398, %v396, %v393
        %v400 = vadd.f32 %v379, 1.0
        %v401 = vadd.f32 %v381, 1.0
        %v402 = vrcp.pop %v400
        %v403 = vrcp.pop %v401
        %vm404 = vcmp.ge.f32.partialorder %v364, 0.0
        %vm405 = vcmp.ge.f32.partialorder %v365, 0.0
        %v406 = vsel %vm404, 1.0, %v379
        %v407 = vsel %vm405, 1.0, %v381
        %v408 = vmul.f32 %v406, %v402
        %v409 = vmul.f32 %v407, %v403
        %v410 = vsel %vm371, %v408, 0.0
        %v411 = vsel %vm371, %v409, 0.0
        %v412 = vmax.f32 %v364, 0.0
        %v413 = vmax.f32 %v365, 0.0
        %v414 = vmul.f32 %v364, %v372
        %v415 = vmul.f32 %v365, %v373
        %v416 = vsub.f32 %v412, %v414
        %v417 = vsub.f32 %v413, %v415
        %v418 = vadd.f32 %v416, %v390
        %v419 = vadd.f32 %v417, %v399
        %vm420 = vcmp.gt.f32.partialorder %v372, 0.5
        %vm421 = vcmp.gt.f32.partialorder %v373, 0.5
        %v422 = vsub.f32 1.0, %v410
        %v423 = vsub.f32 1.0, %v411
        %v424 = vsel %vm420, %v422, %v410
        %v425 = vsel %vm421, %v423, %v411
        %v426 = vmul.f32 %v424, %v424
        %v427 = vmul.f32 %v425, %v425
        %v428 = vmul.f32 %v426, %v418
        %v429 = vmul.f32 %v427, %v419
        %v430 = vsel %vm371, %v428, 0.0
        %v431 = vsel %vm371, %v429, 0.0
        %v432 = vld [vmem:[%s317] sm:$0xff]
        %v433 = vld [vmem:[%s317 + $0x8] sm:$0xff]
        %v434 = vmul.f32 %v372, %v410
        %v435 = vmul.f32 %v373, %v411
        %v436 = vadd.f32 %v432, %v434
        %v437 = vadd.f32 %v433, %v435
        %438 = vst [vmem:[%s317] sm:$0xff] %v436
        %439 = vst [vmem:[%s317 + $0x8] sm:$0xff] %v437
        %v440 = vld [vmem:[%s324] sm:$0xff]
        %v441 = vld [vmem:[%s324 + $0x8] sm:$0xff]
        %v442 = vadd.f32 %v440, %v372
        %v443 = vadd.f32 %v441, %v373
        %444 = vst [vmem:[%s324] sm:$0xff] %v442
        %445 = vst [vmem:[%s324 + $0x8] sm:$0xff] %v443
        %v446 = vld [vmem:[%s331] sm:$0xff]
        %v447 = vld [vmem:[%s331 + $0x8] sm:$0xff]
        %v448 = vadd.f32 %v446, %v410
        %v449 = vadd.f32 %v447, %v411
        %450 = vst [vmem:[%s331] sm:$0xff] %v448
        %451 = vst [vmem:[%s331 + $0x8] sm:$0xff] %v449
        %v452 = vld [vmem:[%s338] sm:$0xff]
        %v453 = vld [vmem:[%s338 + $0x8] sm:$0xff]
        %v454 = vadd.f32 %v452, %v430
        %v455 = vadd.f32 %v453, %v431
        %456 = vst [vmem:[%s338] sm:$0xff] %v454
        %457 = vst [vmem:[%s338 + $0x8] sm:$0xff] %v455
        %s458 = sand.u32 %s116, 1
        %s459 = scalar_lea.sflag [#allocation4], %s458
        %s460 = sand.u32 %s116, 1
        %s461 = smul.addr %s460, 16
        %s462 = scalar_lea.vmem [#allocation7], %s461
        %s463 = sand.u32 %s32, 1
        %s464 = scalar_lea.sflag [#allocation9], %s463
        %s465 = sand.u32 %s142, 1
        %s466 = smul.addr %s465, 16
        %s467 = scalar_lea.vmem [#allocation8], %s466
        %s468 = sand.u32 %s32, 1
        %s469 = scalar_lea.sflag [#allocation9], %s468
        %s470 = sand.u32 %s168, 1
        %s471 = smul.addr %s470, 16
        %s472 = scalar_lea.vmem [#allocation10], %s471
        %s473 = sand.u32 %s194, 1
        %s474 = scalar_lea.sflag [#allocation12], %s473
        %s475 = sand.u32 %s194, 1
        %s476 = smul.addr %s475, 16
        %s477 = scalar_lea.vmem [#allocation11], %s476
        // Predicated region
        $region41: #{tpu_custom_call.1} parent=27 // pred_check
          %p478 = pneg %p126
        $region42: #{tpu_custom_call.1} parent=27 // pred_check_branch
          %480 = sbr.rel (%p478) target = $region44
        $region43: #{tpu_custom_call.1} parent=27 // pred_region
          %s482 = ssub.s32 256, 256
          %483 = vsyncadd %s459, %s482
          %s484 = smul.addr %s36, 2
          %s485 = smul.addr %s484, 128
          %s486 = scalar_lea.hbm %s2, %s485
          %s487 = sshll.u32 %s462, 4
          %s488 = int_to_ptr.vmem [resolvable:$true] %s487
          %493 = dma.vmem_to_hbm [thread:$0]  %s488, 256, %s486, %s459, 128, 128, 8
        $region44: #{tpu_custom_call.1} parent=27 // pred_fallthru
          _
        // Predicated region
        $region45: #{tpu_custom_call.1} parent=27 // pred_check
          %p494 = pneg %p152
        $region46: #{tpu_custom_call.1} parent=27 // pred_check_branch
          %496 = sbr.rel (%p494) target = $region48
        $region47: #{tpu_custom_call.1} parent=27 // pred_region
          %s498 = ssub.s32 256, 256
          %499 = vsyncadd %s464, %s498
          %s500 = smul.addr %s36, 2
          %s501 = smul.addr %s500, 128
          %s502 = scalar_lea.hbm %s3, %s501
          %s503 = sshll.u32 %s467, 4
          %s504 = int_to_ptr.vmem [resolvable:$true] %s503
          %509 = dma.vmem_to_hbm [thread:$0]  %s504, 256, %s502, %s464, 128, 128, 8
        $region48: #{tpu_custom_call.1} parent=27 // pred_fallthru
          _
        // Predicated region
        $region49: #{tpu_custom_call.1} parent=27 // pred_check
          %p510 = pneg %p178
        $region50: #{tpu_custom_call.1} parent=27 // pred_check_branch
          %512 = sbr.rel (%p510) target = $region52
        $region51: #{tpu_custom_call.1} parent=27 // pred_region
          %s514 = ssub.s32 256, 256
          %515 = vsyncadd %s469, %s514
          %s516 = smul.addr %s36, 2
          %s517 = smul.addr %s516, 128
          %s518 = scalar_lea.hbm %s4, %s517
          %s519 = sshll.u32 %s472, 4
          %s520 = int_to_ptr.vmem [resolvable:$true] %s519
          %525 = dma.vmem_to_hbm [thread:$0]  %s520, 256, %s518, %s469, 128, 128, 8
        $region52: #{tpu_custom_call.1} parent=27 // pred_fallthru
          _
        // Predicated region
        $region53: #{tpu_custom_call.1} parent=27 // pred_check
          %p526 = pneg %p204
        $region54: #{tpu_custom_call.1} parent=27 // pred_check_branch
          %528 = sbr.rel (%p526) target = $region56
        $region55: #{tpu_custom_call.1} parent=27 // pred_region
          %s530 = ssub.s32 256, 256
          %531 = vsyncadd %s474, %s530
          %s532 = smul.addr %s36, 2
          %s533 = smul.addr %s532, 128
          %s534 = scalar_lea.hbm %s5, %s533
          %s535 = sshll.u32 %s477, 4
          %s536 = int_to_ptr.vmem [resolvable:$true] %s535
          %541 = dma.vmem_to_hbm [thread:$0]  %s536, 256, %s534, %s474, 128, 128, 8
        $region56: #{tpu_custom_call.1} parent=27 // pred_fallthru
          _
      $region28: #{tpu_custom_call.1} parent=5 // pred_fallthru
        _
      %p542 = scmp.le.s32.totalorder 2, %s27
      // Predicated region
      $region57: #{tpu_custom_call.1} parent=5 // pred_check
        %p543 = pneg %p542
      $region58: #{tpu_custom_call.1} parent=5 // pred_check_branch
        %545 = sbr.rel (%p543) target = $region60
      $region59: #{tpu_custom_call.1} parent=5 // pred_region
        %s546 = ssub.s32 %s27, 2
        // Predicated region
        $region61: #{tpu_custom_call.1} parent=59 // pred_check
          %p547 = pneg %p132
        $region62: #{tpu_custom_call.1} parent=59 // pred_check_branch
          %549 = sbr.rel (%p547) target = $region64
        $region63: #{tpu_custom_call.1} parent=59 // pred_region
          %s550 = sand.u32 %s117, 1
          %s551 = scalar_lea.sflag [#allocation4], %s550
          %s552 = sand.u32 %s117, 1
          %s553 = smul.addr %s552, 16
          %s554 = scalar_lea.vmem [#allocation7], %s553
          %555 = dma.done %s551, 256
        $region64: #{tpu_custom_call.1} parent=59 // pred_fallthru
          _
        // Predicated region
        $region65: #{tpu_custom_call.1} parent=59 // pred_check
          %p556 = pneg %p158
        $region66: #{tpu_custom_call.1} parent=59 // pred_check_branch
          %558 = sbr.rel (%p556) target = $region68
        $region67: #{tpu_custom_call.1} parent=59 // pred_region
          %s559 = sand.u32 %s33, 1
          %s560 = scalar_lea.sflag [#allocation9], %s559
          %s561 = sand.u32 %s143, 1
          %s562 = smul.addr %s561, 16
          %s563 = scalar_lea.vmem [#allocation8], %s562
          %564 = dma.done %s560, 256
        $region68: #{tpu_custom_call.1} parent=59 // pred_fallthru
          _
        // Predicated region
        $region69: #{tpu_custom_call.1} parent=59 // pred_check
          %p565 = pneg %p184
        $region70: #{tpu_custom_call.1} parent=59 // pred_check_branch
          %567 = sbr.rel (%p565) target = $region72
        $region71: #{tpu_custom_call.1} parent=59 // pred_region
          %s568 = sand.u32 %s33, 1
          %s569 = scalar_lea.sflag [#allocation9], %s568
          %s570 = sand.u32 %s169, 1
          %s571 = smul.addr %s570, 16
          %s572 = scalar_lea.vmem [#allocation10], %s571
          %573 = dma.done %s569, 256
        $region72: #{tpu_custom_call.1} parent=59 // pred_fallthru
          _
        // Predicated region
        $region73: #{tpu_custom_call.1} parent=59 // pred_check
          %p574 = pneg %p210
        $region74: #{tpu_custom_call.1} parent=59 // pred_check_branch
          %576 = sbr.rel (%p574) target = $region76
        $region75: #{tpu_custom_call.1} parent=59 // pred_region
          %s577 = sand.u32 %s195, 1
          %s578 = scalar_lea.sflag [#allocation12], %s577
          %s579 = sand.u32 %s195, 1
          %s580 = smul.addr %s579, 16
          %s581 = scalar_lea.vmem [#allocation11], %s580
          %582 = dma.done %s578, 256
        $region76: #{tpu_custom_call.1} parent=59 // pred_fallthru
          _
      $region60: #{tpu_custom_call.1} parent=5 // pred_fallthru
        _
    $region6: #{tpu_custom_call.1} parent=1 // loop_footer
      %s31 = sadd.s32 1, %s27
    $region7: #{tpu_custom_call.1} parent=1 // loop_footer_branch
      %26 = sbr.rel target = $region3
    $region8: #{tpu_custom_call.1} parent=1 // loop_exit
      _
    %583 = vsyncpa [#allocation3], 1
    %s584 = scalar_lea.sflag [#allocation3], 1
    %585 = vsyncpa %s584, 1
    %586 = vsyncpa [#allocation6], 1
    %s587 = scalar_lea.sflag [#allocation6], 1
    %588 = vsyncpa %s587, 1
    %589 = vsyncpa [#allocation4], 1
    %s590 = scalar_lea.sflag [#allocation4], 1
    %591 = vsyncpa %s590, 1
    %592 = vsyncpa [#allocation9], 1
    %s593 = scalar_lea.sflag [#allocation9], 1
    %594 = vsyncpa %s593, 1
    %595 = vsyncpa [#allocation12], 1
    %s596 = scalar_lea.sflag [#allocation12], 1
    %597 = vsyncpa %s596, 1

</llo_original>
